<compile_context>
chip_gen: v7x
topology: tpu7x:2x2x1
jax: 0.10.0
libtpu: 0.0.40
codegen_flags: <defaults>
</compile_context>

<pallas_src>
import numpy as np
import jax
import jax.numpy as jnp
from jax.experimental import pallas as pl
from jax.experimental.pallas import tpu as pltpu


# ------------------------------- fused kernel -------------------------------
def _prefix_encoder_kernel(x_ref, w1_ref, b1_ref, w2_ref, b2_ref, o_ref):
    # [tile, H] @ [H, Ph] -> [tile, Ph]   (MXU, f32 accumulation)
    h = jnp.dot(x_ref[...], w1_ref[...], preferred_element_type=jnp.float32)
    h = jnp.tanh(h + b1_ref[...])                 # bias + tanh in f32 (VPU/EUP)
    h = h.astype(w2_ref.dtype)                    # feed MXU in the weight dtype
    # [tile, Ph] @ [Ph, tn] -> [tile, tn]
    y = jnp.dot(h, w2_ref[...], preferred_element_type=jnp.float32)
    o_ref[...] = (y + b2_ref[...]).astype(o_ref.dtype)


# ------------------------------ param prep (once) ---------------------------
def prepare_prefix_encoder_params(raw_params, mxu_dtype=jnp.float32):
    """Cast / lay out the weights ONCE, outside the per-call path.

    raw_params: {"w1": [H, Ph], "b1": [Ph], "w2": [Ph, Out], "b2": [Out]}  ([in, out] layout).
    """
    return {
        "w1": jnp.asarray(raw_params["w1"], mxu_dtype),
        "b1": jnp.asarray(raw_params["b1"], jnp.float32).reshape(1, -1),
        "w2": jnp.asarray(raw_params["w2"], mxu_dtype),
        "b2": jnp.asarray(raw_params["b2"], jnp.float32).reshape(1, -1),
    }


# --------------------------------- helpers -----------------------------------
def _round_up(x, m):
    return ((x + m - 1) // m) * m


def _pick_out_tile(out_dim, requested):
    """Largest multiple of 128 <= requested that divides Out (lane-dense, no padding)."""
    requested = max(128, int(requested))
    if out_dim <= requested:
        return out_dim                       # full dim is always a legal block width
    if out_dim % 128 != 0:
        return out_dim                       # can't split lane-aligned; keep full width
    t = (requested // 128) * 128
    while t >= 128:
        if out_dim % t == 0:
            return t
        t -= 128
    return out_dim


def _vmem_cap_bytes():
    # ~75% of physical VMEM (headroom for compiler scratch / double-buffering).
    try:
        info = pltpu.get_tpu_info()
        cap = getattr(info, "vmem_capacity_bytes", None)
        if cap:
            return int(cap) * 3 // 4
    except Exception:
        pass
    return 48 * 1024 * 1024                  # conservative fallback: safe on v7x (64 MiB)


# --------------------------------- wrapper ----------------------------------
def prefix_encoder_forward(prefix_token_embeddings, params, *, row_tile=256,
                           out_tile=2048, out_dtype=None):
    """prefix_token_embeddings: [..., H] -> [..., n_layer*2*H].

    `params` should come from prepare_prefix_encoder_params (weights already in the
    desired MXU dtype; no per-call weight casts happen here).
    """
    x = prefix_token_embeddings
    lead_shape = x.shape[:-1]
    H = x.shape[-1]
    x2 = x.reshape(-1, H)
    R = x2.shape[0]

    w1, b1, w2, b2 = params["w1"], params["b1"], params["w2"], params["b2"]
    Ph, Out = w1.shape[1], w2.shape[1]
    if out_dtype is None:
        out_dtype = x.dtype                  # writeback in the activation dtype

    # Only the (small) activations get cast per call; weights are pre-cast.
    if x2.dtype != w1.dtype:
        x2 = x2.astype(w1.dtype)

    x_item = jnp.dtype(x2.dtype).itemsize
    w1_item = jnp.dtype(w1.dtype).itemsize
    w2_item = jnp.dtype(w2.dtype).itemsize
    out_item = jnp.dtype(out_dtype).itemsize

    # Row tile: multiple of the sublane packing for the MXU operand dtype.
    sub = 8 if x_item == 4 else (16 if x_item == 2 else 32)
    tile = max(sub, min(int(row_tile), R))
    tile = _round_up(tile, sub)
    Rp = _round_up(R, tile)
    if Rp != R:                              # padded rows compute tanh(b1); sliced off below
        x2 = jnp.pad(x2, ((0, Rp - R), (0, 0)))
    n_row = Rp // tile

    # Output-feature tile (lane-dense multiple of 128 that divides Out).
    tn = _pick_out_tile(Out, out_tile)
    n_out = Out // tn

    # VMEM budget: double-buffered x / w2-tile / out-tile + resident w1/b1/b2 + f32 temps.
    vmem_bytes = (2 * tile * H * x_item
                  + 2 * Ph * tn * w2_item
                  + 2 * tile * tn * out_item
                  + 2 * (H * Ph * w1_item + Ph * 4 + tn * 4)
                  + tile * tn * 4 + tile * Ph * 4)
    vmem_limit = int(min(max(2 * vmem_bytes, 4 * 1024 * 1024), _vmem_cap_bytes()))

    cost = pl.CostEstimate(
        flops=2 * R * H * Ph * n_out + 2 * R * Ph * Out,
        transcendentals=R * Ph * n_out,
        bytes_accessed=(n_out * Rp * H * x_item          # x re-read once per Out tile
                        + H * Ph * w1_item + Ph * 4      # w1/b1 (resident)
                        + Ph * Out * w2_item + Out * 4   # w2/b2 read once per call
                        + Rp * Out * out_item),          # output writeback
    )

    # Grid order (out, row): row axis innermost -> the current w2/b2 Out-tile keeps a
    # constant block index across inner steps and is never re-streamed.
    out = pl.pallas_call(
        _prefix_encoder_kernel,
        out_shape=jax.ShapeDtypeStruct((Rp, Out), out_dtype),
        grid=(n_out, n_row),
        in_specs=[
            pl.BlockSpec((tile, H), lambda j, i: (i, 0)),   # streamed row tile
            pl.BlockSpec((H, Ph),   lambda j, i: (0, 0)),   # resident small weights
            pl.BlockSpec((1, Ph),   lambda j, i: (0, 0)),
            pl.BlockSpec((Ph, tn),  lambda j, i: (0, j)),   # Out-tiled big weight
            pl.BlockSpec((1, tn),   lambda j, i: (0, j)),
        ],
        out_specs=pl.BlockSpec((tile, tn), lambda j, i: (i, j)),
        compiler_params=pltpu.CompilerParams(
            dimension_semantics=("parallel", "parallel"),
            vmem_limit_bytes=vmem_limit,
        ),
        cost_estimate=cost,
    )(x2, w1, b1, w2, b2)

    if Rp != R:
        out = out[:R]
    return out.reshape(*lead_shape, Out)


# ---------------------------- pure-JAX reference ----------------------------
def prefix_encoder_reference(prefix_token_embeddings, raw_params):
    h = jnp.tanh(prefix_token_embeddings @ raw_params["w1"] + raw_params["b1"])
    return h @ raw_params["w2"] + raw_params["b2"]


if __name__ == "__main__":
    # Small config consistent with PrefixEncoder:
    #   hidden_size=32, prefix_hidden_size=16, num_hidden_layers=4,
    #   n_tokens (prefix length)=8, batch=2  -> output dim = 4*2*32 = 256
    B, T, H, PH, L = 2, 8, 32, 16, 4
    OUT = L * 2 * H

    key = jax.random.PRNGKey(0)
    k = jax.random.split(key, 5)
    raw_params = {
        "w1": jax.random.normal(k[0], (H, PH), jnp.float32) * 0.05,    # [in, out]
        "b1": jax.random.normal(k[1], (PH,), jnp.float32) * 0.01,
        "w2": jax.random.normal(k[2], (PH, OUT), jnp.float32) * 0.05,  # [in, out]
        "b2": jax.random.normal(k[3], (OUT,), jnp.float32) * 0.01,
    }
    prefix_token_embeddings = jax.random.normal(k[4], (B, T, H), jnp.float32)

    ref = prefix_encoder_reference(prefix_token_embeddings, raw_params)

    # f32 path (exact): row_tile=8, out_tile=128 exercises a 2x2 (out, row) grid with the
    # w2 Out-tile resident across the inner row steps.
    params_f32 = prepare_prefix_encoder_params(raw_params, mxu_dtype=jnp.float32)
    out = prefix_encoder_forward(prefix_token_embeddings, params_f32,
                                 row_tile=8, out_tile=128, out_dtype=jnp.float32)
    out = jax.block_until_ready(out)
    np.testing.assert_allclose(np.asarray(out), np.asarray(ref), rtol=1e-5, atol=1e-5)

    # bf16 path: weights pre-cast ONCE outside the call, bf16 output writeback
    # (halves the dominant HBM terms on all generations); loose tolerance.
    params_bf16 = prepare_prefix_encoder_params(raw_params, mxu_dtype=jnp.bfloat16)
    out_bf16 = prefix_encoder_forward(prefix_token_embeddings, params_bf16,
                                      row_tile=8, out_tile=128, out_dtype=jnp.bfloat16)
    out_bf16 = jax.block_until_ready(out_bf16)
    np.testing.assert_allclose(np.asarray(out_bf16, dtype=np.float32), np.asarray(ref),
                               rtol=5e-2, atol=5e-2)

    print("KERNEL_OK")
</pallas_src>

<mosaic_0001>
module attributes {stable_mosaic.version = 11 : i64} {
  func.func @_prefix_encoder_kernel(%arg0: i32, %arg1: i32, %arg2: memref<8x32xf32, #tpu.memory_space<vmem>>, %arg3: memref<32x16xf32, #tpu.memory_space<vmem>>, %arg4: memref<1x16xf32, #tpu.memory_space<vmem>>, %arg5: memref<16x128xf32, #tpu.memory_space<vmem>>, %arg6: memref<1x128xf32, #tpu.memory_space<vmem>>, %arg7: memref<8x128xf32, #tpu.memory_space<vmem>>) attributes {dimension_semantics = [#tpu.dimension_semantics<parallel>, #tpu.dimension_semantics<parallel>], iteration_bounds = array<i64: 2, 2>, scalar_prefetch = 0 : i64, scratch_operands = 0 : i64, tpu.core_type = #tpu.core_type<tc>, window_params = [{transform_indices = @transform_0, window_bounds = array<i64: 8, 32>}, {pipeline_mode = #tpu.pipeline_mode<synchronous>, transform_indices = @transform_1, window_bounds = array<i64: 32, 16>}, {pipeline_mode = #tpu.pipeline_mode<synchronous>, transform_indices = @transform_2, window_bounds = array<i64: 1, 16>}, {transform_indices = @transform_3, window_bounds = array<i64: 16, 128>}, {transform_indices = @transform_4, window_bounds = array<i64: 1, 128>}, {transform_indices = @transform_5, window_bounds = array<i64: 8, 128>}]} {
    %c0 = arith.constant 0 : index
    %c0_0 = arith.constant 0 : index
    %0 = vector.load %arg2[%c0, %c0_0] : memref<8x32xf32, #tpu.memory_space<vmem>>, vector<8x32xf32>
    %c0_1 = arith.constant 0 : index
    %c0_2 = arith.constant 0 : index
    %1 = vector.load %arg3[%c0_1, %c0_2] : memref<32x16xf32, #tpu.memory_space<vmem>>, vector<32x16xf32>
    %cst = arith.constant dense<0.000000e+00> : vector<8x16xf32>
    %2 = tpu.matmul %0, %1, %cst {dimension_numbers = #tpu.dot_dimension_numbers<[1], [0], [0], [1], [0, 0, 1, 1], [], []>} : vector<8x32xf32>, vector<32x16xf32>, vector<8x16xf32> -> vector<8x16xf32>
    %c0_3 = arith.constant 0 : index
    %c0_4 = arith.constant 0 : index
    %3 = vector.load %arg4[%c0_3, %c0_4] : memref<1x16xf32, #tpu.memory_space<vmem>>, vector<1x16xf32>
    %4 = vector.broadcast %3 : vector<1x16xf32> to vector<8x16xf32>
    %5 = arith.addf %2, %4 : vector<8x16xf32>
    %6 = math.tanh %5 : vector<8x16xf32>
    %c0_5 = arith.constant 0 : index
    %c0_6 = arith.constant 0 : index
    %7 = vector.load %arg5[%c0_5, %c0_6] : memref<16x128xf32, #tpu.memory_space<vmem>>, vector<16x128xf32>
    %cst_7 = arith.constant dense<0.000000e+00> : vector<8x128xf32>
    %8 = tpu.matmul %6, %7, %cst_7 {dimension_numbers = #tpu.dot_dimension_numbers<[1], [0], [0], [1], [0, 0, 1, 1], [], []>} : vector<8x16xf32>, vector<16x128xf32>, vector<8x128xf32> -> vector<8x128xf32>
    %c0_8 = arith.constant 0 : index
    %c0_9 = arith.constant 0 : index
    %9 = vector.load %arg6[%c0_8, %c0_9] : memref<1x128xf32, #tpu.memory_space<vmem>>, vector<1x128xf32>
    %10 = vector.broadcast %9 : vector<1x128xf32> to vector<8x128xf32>
    %11 = arith.addf %8, %10 : vector<8x128xf32>
    %c0_10 = arith.constant 0 : index
    %c0_11 = arith.constant 0 : index
    %12 = vector.load %arg7[%c0_10, %c0_11] : memref<8x128xf32, #tpu.memory_space<vmem>>, vector<8x128xf32>
    tpu.vector_store %arg7[%c0_10, %c0_11], %11 {strides = array<i32>} : memref<8x128xf32, #tpu.memory_space<vmem>>, vector<8x128xf32>,
    return
  }
  func.func @transform_0(%arg0: i32, %arg1: i32) -> (i32, i32) {
    %c0_i32 = arith.constant 0 : i32
    %c0_i32_0 = arith.constant 0 : i32
    return %arg1, %c0_i32 : i32, i32
  }
  func.func @transform_1(%arg0: i32, %arg1: i32) -> (i32, i32) {
    %c0_i32 = arith.constant 0 : i32
    %c0_i32_0 = arith.constant 0 : i32
    %c0_i32_1 = arith.constant 0 : i32
    return %c0_i32, %c0_i32_0 : i32, i32
  }
  func.func @transform_2(%arg0: i32, %arg1: i32) -> (i32, i32) {
    %c0_i32 = arith.constant 0 : i32
    %c0_i32_0 = arith.constant 0 : i32
    %c0_i32_1 = arith.constant 0 : i32
    return %c0_i32, %c0_i32_0 : i32, i32
  }
  func.func @transform_3(%arg0: i32, %arg1: i32) -> (i32, i32) {
    %c0_i32 = arith.constant 0 : i32
    %c0_i32_0 = arith.constant 0 : i32
    return %c0_i32, %arg0 : i32, i32
  }
  func.func @transform_4(%arg0: i32, %arg1: i32) -> (i32, i32) {
    %c0_i32 = arith.constant 0 : i32
    %c0_i32_0 = arith.constant 0 : i32
    return %c0_i32, %arg0 : i32, i32
  }
  func.func @transform_5(%arg0: i32, %arg1: i32) -> (i32, i32) {
    %c0_i32 = arith.constant 0 : i32
    return %arg1, %arg0 : i32, i32
  }
}

</mosaic_0001>

<llo_original>
// kernel: tpu_custom_call.1
$region0: #{tpu_custom_call.1}
  #allocation0 [shape = 'u32[]', space=smem, size = 0x4, offset = 0x4, fixed_abs, tag = 'smem constant byte address 0x4 - core index']
  #allocation1 [shape = 'u32[144,128]{1,0:T(1,128)}', space=vmem, size = 0x12000, scoped, tag = 'internal scratch']
  %s0 = inlined_call_operand.vmem [shape: f32[16,32], index: 0, kind: input, shape index: {}]
  %s1 = inlined_call_operand.vmem [shape: f32[32,16], index: 1, kind: input, shape index: {}]
  %s2 = inlined_call_operand.vmem [shape: f32[1,16], index: 2, kind: input, shape index: {}]
  %s3 = inlined_call_operand.vmem [shape: f32[16,256], index: 3, kind: input, shape index: {}]
  %s4 = inlined_call_operand.vmem [shape: f32[1,256], index: 4, kind: input, shape index: {}]
  %s5 = inlined_call_operand.hbm [shape: f32[16,256], index: 5, kind: output, shape index: {}]
  %s6 = sld [smem:[#allocation0]]
  $region91: #{tpu_custom_call.1} parent=0
    _
  %s8 = ssub.s32 1, %s6
  %s9 = scalar_select 0, %s8, %s6
  $region1: #{tpu_custom_call.1} parent=0
    #allocation2 [shape = 'u8[16384]{0}', space=vmem, size = 0x4000, scoped, tag = 'input window, operand 3']
    #allocation3 [shape = 'u8[8192]{0}', space=vmem, size = 0x2000, scoped, tag = 'output window, operand 0']
    #allocation4 [shape = 's32[2]{0}', space=sflag, size = 0x8, scoped, tag = 'scoped memory for tpu_custom_call.1']
    %10 = vsyncpa [#allocation4], 0
    %s11 = scalar_lea.sflag [#allocation4], 1
    %12 = vsyncpa %s11, 0
    loop: start=0, step=1, limit=6
    $region2: #{tpu_custom_call.1} parent=1 // loop_pre_header
      _
    $region3: #{tpu_custom_call.1} parent=1 // loop_header
      %s14 = sphi 0, %s18
      %p15 = scmp.ge.s32.totalorder %s14, 6
      %s21 = sphi 0, %s33
      %s22 = sphi 0, %s29
      %s23 = sphi 0, %s21
      %s24 = sphi 0, %s22
      %s25 = sphi 0, %s23
      %s26 = sphi 0, %s24
      %s36 = sphi 0, %s38
      %s39 = sphi 0, %s36
      %s40 = sphi 0, %s39
      %s56 = sphi 0, %s40
      %s60 = sphi 0, %s60
      %s62 = sphi 0, %s60
      %s63 = sphi 0, %s62
      %s77 = sphi 0, %s63
      %s81 = sphi 0, %s81
      %s83 = sphi 0, %s81
      %s84 = sphi 0, %s83
      %s98 = sphi 0, %s84
      %s104 = sphi 0, %s106
      %s107 = sphi 0, %s104
      %s108 = sphi 0, %s107
      %s124 = sphi 0, %s108
      %s130 = sphi 0, %s132
      %s133 = sphi 0, %s130
      %s134 = sphi 0, %s133
      %s150 = sphi 0, %s134
      %s158 = sphi 0, %s160
      %s161 = sphi 0, %s158
      %s162 = sphi 0, %s161
      %s178 = sphi 0, %s162
    $region4: #{tpu_custom_call.1} parent=1 // loop_header_branch
      %17 = sbr.rel (%p15) target = $region8
    $region5: #{tpu_custom_call.1} parent=1 // loop_body
      %s19 = ssub.s32 %s14, 1
      %s20 = ssub.s32 %s14, 2
      %s27 = sadd.s32 1, %s22
      %p28 = scmp.ge.s32.totalorder %s27, 2
      %s29 = scalar_select %p28, 0, %s27
      %s30 = sadd.s32 1, %s21
      %s31 = scalar_select %p28, %s30, %s21
      %p32 = scmp.ge.s32.totalorder %s31, 2
      %s33 = scalar_select %p32, 0, %s31
      %s34 = ssub.s32 %s22, %s29
      %p35 = scmp.eq.s32.totalorder %s34, 0
      %s37 = sadd.s32 %s36, 1
      %s38 = scalar_select %p35, %s36, %s37
      %p41 = pneg %p35
      %p42 = scmp.eq.s32.totalorder %s14, 3
      %p43 = por %p41, %p42
      %p44 = scmp.ne.s32.totalorder %s36, %s39
      %p45 = scmp.eq.s32.totalorder %s14, 0
      %p46 = por %p44, %p45
      %p47 = scmp.ne.s32.totalorder %s36, %s39
      %p48 = scmp.eq.s32.totalorder %s19, 3
      %p49 = por %p47, %p48
      %p50 = scmp.ne.s32.totalorder %s39, %s40
      %p51 = scmp.eq.s32.totalorder %s19, 0
      %p52 = por %p50, %p51
      %p53 = scmp.ne.s32.totalorder %s39, %s40
      %p54 = scmp.eq.s32.totalorder %s20, 3
      %p55 = por %p53, %p54
      %p57 = scmp.ne.s32.totalorder %s40, %s56
      %p58 = scmp.eq.s32.totalorder %s20, 0
      %p59 = por %p57, %p58
      %s61 = sadd.s32 %s60, 1
      %p64 = scmp.eq.s32.totalorder %s14, 3
      %p65 = scmp.ne.s32.totalorder %s60, %s62
      %p66 = scmp.eq.s32.totalorder %s14, 0
      %p67 = por %p65, %p66
      %p68 = scmp.ne.s32.totalorder %s60, %s62
      %p69 = scmp.eq.s32.totalorder %s19, 3
      %p70 = por %p68, %p69
      %p71 = scmp.ne.s32.totalorder %s62, %s63
      %p72 = scmp.eq.s32.totalorder %s19, 0
      %p73 = por %p71, %p72
      %p74 = scmp.ne.s32.totalorder %s62, %s63
      %p75 = scmp.eq.s32.totalorder %s20, 3
      %p76 = por %p74, %p75
      %p78 = scmp.ne.s32.totalorder %s63, %s77
      %p79 = scmp.eq.s32.totalorder %s20, 0
      %p80 = por %p78, %p79
      %s82 = sadd.s32 %s81, 1
      %p85 = scmp.eq.s32.totalorder %s14, 3
      %p86 = scmp.ne.s32.totalorder %s81, %s83
      %p87 = scmp.eq.s32.totalorder %s14, 0
      %p88 = por %p86, %p87
      %p89 = scmp.ne.s32.totalorder %s81, %s83
      %p90 = scmp.eq.s32.totalorder %s19, 3
      %p91 = por %p89, %p90
      %p92 = scmp.ne.s32.totalorder %s83, %s84
      %p93 = scmp.eq.s32.totalorder %s19, 0
      %p94 = por %p92, %p93
      %p95 = scmp.ne.s32.totalorder %s83, %s84
      %p96 = scmp.eq.s32.totalorder %s20, 3
      %p97 = por %p95, %p96
      %p99 = scmp.ne.s32.totalorder %s84, %s98
      %p100 = scmp.eq.s32.totalorder %s20, 0
      %p101 = por %p99, %p100
      %s102 = ssub.s32 %s21, %s33
      %p103 = scmp.eq.s32.totalorder %s102, 0
      %s105 = sadd.s32 %s104, 1
      %s106 = scalar_select %p103, %s104, %s105
      %p109 = pneg %p103
      %p110 = scmp.eq.s32.totalorder %s14, 3
      %p111 = por %p109, %p110
      %p112 = scmp.ne.s32.totalorder %s104, %s107
      %p113 = scmp.eq.s32.totalorder %s14, 0
      %p114 = por %p112, %p113
      %p115 = scmp.ne.s32.totalorder %s104, %s107
      %p116 = scmp.eq.s32.totalorder %s19, 3
      %p117 = por %p115, %p116
      %p118 = scmp.ne.s32.totalorder %s107, %s108
      %p119 = scmp.eq.s32.totalorder %s19, 0
      %p120 = por %p118, %p119
      %p121 = scmp.ne.s32.totalorder %s107, %s108
      %p122 = scmp.eq.s32.totalorder %s20, 3
      %p123 = por %p121, %p122
      %p125 = scmp.ne.s32.totalorder %s108, %s124
      %p126 = scmp.eq.s32.totalorder %s20, 0
      %p127 = por %p125, %p126
      %s128 = ssub.s32 %s21, %s33
      %p129 = scmp.eq.s32.totalorder %s128, 0
      %s131 = sadd.s32 %s130, 1
      %s132 = scalar_select %p129, %s130, %s131
      %p135 = pneg %p129
      %p136 = scmp.eq.s32.totalorder %s14, 3
      %p137 = por %p135, %p136
      %p138 = scmp.ne.s32.totalorder %s130, %s133
      %p139 = scmp.eq.s32.totalorder %s14, 0
      %p140 = por %p138, %p139
      %p141 = scmp.ne.s32.totalorder %s130, %s133
      %p142 = scmp.eq.s32.totalorder %s19, 3
      %p143 = por %p141, %p142
      %p144 = scmp.ne.s32.totalorder %s133, %s134
      %p145 = scmp.eq.s32.totalorder %s19, 0
      %p146 = por %p144, %p145
      %p147 = scmp.ne.s32.totalorder %s133, %s134
      %p148 = scmp.eq.s32.totalorder %s20, 3
      %p149 = por %p147, %p148
      %p151 = scmp.ne.s32.totalorder %s134, %s150
      %p152 = scmp.eq.s32.totalorder %s20, 0
      %p153 = por %p151, %p152
      %s154 = ssub.s32 %s22, %s29
      %s155 = ssub.s32 %s21, %s33
      %s156 = sor.u32 %s154, %s155
      %p157 = scmp.eq.s32.totalorder %s156, 0
      %s159 = sadd.s32 %s158, 1
      %s160 = scalar_select %p157, %s158, %s159
      %p163 = pneg %p157
      %p164 = scmp.eq.s32.totalorder %s14, 3
      %p165 = por %p163, %p164
      %p166 = scmp.ne.s32.totalorder %s158, %s161
      %p167 = scmp.eq.s32.totalorder %s14, 0
      %p168 = por %p166, %p167
      %p169 = scmp.ne.s32.totalorder %s158, %s161
      %p170 = scmp.eq.s32.totalorder %s19, 3
      %p171 = por %p169, %p170
      %p172 = scmp.ne.s32.totalorder %s161, %s162
      %p173 = scmp.eq.s32.totalorder %s19, 0
      %p174 = por %p172, %p173
      %p175 = scmp.ne.s32.totalorder %s161, %s162
      %p176 = scmp.eq.s32.totalorder %s20, 3
      %p177 = por %p175, %p176
      %p179 = scmp.ne.s32.totalorder %s162, %s178
      %p180 = scmp.eq.s32.totalorder %s20, 0
      %p181 = por %p179, %p180
      %p182 = scmp.le.s32.totalorder 1, %s14
      %p183 = scmp.lt.s32.totalorder %s14, 5
      %p184 = pnand %p182, %p183
      %p185 = pneg %p184
      // Predicated region
      $region9: #{tpu_custom_call.1} parent=5 // pred_check
        _
      $region10: #{tpu_custom_call.1} parent=5 // pred_check_branch
        %187 = sbr.rel (%p184) target = $region12
      $region11: #{tpu_custom_call.1} parent=5 // pred_region
        %s188 = ssub.s32 %s14, 1
        // Predicated region
        $region13: #{tpu_custom_call.1} parent=11 // pred_check
          %p189 = pneg %p73
        $region14: #{tpu_custom_call.1} parent=11 // pred_check_branch
          %191 = sbr.rel (%p189) target = $region16
        $region15: #{tpu_custom_call.1} parent=11 // pred_region
          _
        $region16: #{tpu_custom_call.1} parent=11 // pred_fallthru
          _
        // Predicated region
        $region17: #{tpu_custom_call.1} parent=11 // pred_check
          %p192 = pneg %p94
        $region18: #{tpu_custom_call.1} parent=11 // pred_check_branch
          %194 = sbr.rel (%p192) target = $region20
        $region19: #{tpu_custom_call.1} parent=11 // pred_region
          _
        $region20: #{tpu_custom_call.1} parent=11 // pred_fallthru
          _
      $region12: #{tpu_custom_call.1} parent=5 // pred_fallthru
        _
      %p195 = scmp.lt.s32.totalorder %s14, 4
      // Predicated region
      $region21: #{tpu_custom_call.1} parent=5 // pred_check
        %p196 = pneg %p195
      $region22: #{tpu_custom_call.1} parent=5 // pred_check_branch
        %198 = sbr.rel (%p196) target = $region24
      $region23: #{tpu_custom_call.1} parent=5 // pred_region
        // Predicated region
        $region25: #{tpu_custom_call.1} parent=23 // pred_check
          %p199 = pneg %p46
        $region26: #{tpu_custom_call.1} parent=23 // pred_check_branch
          %201 = sbr.rel (%p199) target = $region28
        $region27: #{tpu_custom_call.1} parent=23 // pred_region
          %p202 = scmp.lt.s32.totalorder %s22, 1
          %s203 = scalar_select %p202, %s22, 1
          %s204 = smul.addr %s203, 8
          %s205 = scalar_lea.vmem %s0, %s204
        $region28: #{tpu_custom_call.1} parent=23 // pred_fallthru
          _
        // Predicated region
        $region29: #{tpu_custom_call.1} parent=23 // pred_check
          %p206 = pneg %p114
        $region30: #{tpu_custom_call.1} parent=23 // pred_check_branch
          %208 = sbr.rel (%p206) target = $region32
        $region31: #{tpu_custom_call.1} parent=23 // pred_region
          %s209 = sand.u32 %s104, 1
          %s210 = sand.u32 %s104, 1
          %s211 = smul.addr %s210, 16
          %s212 = scalar_lea.vmem [#allocation2], %s211
          %s213 = smul.addr %s21, 8
          %s214 = scalar_lea.vmem %s3, %s213
          // Predicated region
          $region33: #{tpu_custom_call.1} parent=31 // pred_check
            _
          $region34: #{tpu_custom_call.1} parent=31 // pred_check_branch
            %216 = sbr.rel (0) target = $region36
          $region35: #{tpu_custom_call.1} parent=31 // pred_region
            // Predicated region
            $region37: #{tpu_custom_call.1} parent=35 // pred_check
              _
            $region38: #{tpu_custom_call.1} parent=35 // pred_check_branch
              %218 = sbr.rel (0) target = $region40
            $region39: #{tpu_custom_call.1} parent=35 // pred_region
              // Predicated region
              $region52: #{tpu_custom_call.1} parent=39 // pred_check
                _
              $region53: #{tpu_custom_call.1} parent=39 // pred_check_branch
                %235 = sbr.rel (0) target = $region55
              $region54: #{tpu_custom_call.1} parent=39 // pred_region
                loop: start=0, step=1, limit=1
                $region56: #{tpu_custom_call.1} parent=54 // loop_pre_header
                  _
                $region57: #{tpu_custom_call.1} parent=54 // loop_header
                  %s237 = sphi 0, %s241
                  %p238 = scmp.ge.s32.totalorder %s237, 1
                  %s242 = sphi %s214, %s214
                  %s243 = sphi %s212, %s212
                $region58: #{tpu_custom_call.1} parent=54 // loop_header_branch
                  %240 = sbr.rel (%p238) target = $region62
                $region59: #{tpu_custom_call.1} parent=54 // loop_body
                  %v244 = vld [vmem:[%s242] sm:$0xff]
                  %245 = vst [vmem:[%s243] sm:$0xff] %v244
                  %v246 = vld [vmem:[%s242 + $0x10] sm:$0xff]
                  %247 = vst [vmem:[%s243 + $0x8] sm:$0xff] %v246
                $region60: #{tpu_custom_call.1} parent=54 // loop_footer
                  %s241 = sadd.s32 1, %s237
                $region61: #{tpu_custom_call.1} parent=54 // loop_footer_branch
                  %236 = sbr.rel target = $region57
                $region62: #{tpu_custom_call.1} parent=54 // loop_exit
                  _
              $region55: #{tpu_custom_call.1} parent=39 // pred_fallthru
                _
              // Predicated region
              $region63: #{tpu_custom_call.1} parent=39 // pred_check
                _
              $region64: #{tpu_custom_call.1} parent=39 // pred_check_branch
                %249 = sbr.rel target = $region66
              $region65: #{tpu_custom_call.1} parent=39 // pred_region
                _
              $region66: #{tpu_custom_call.1} parent=39 // pred_fallthru
                _
            $region40: #{tpu_custom_call.1} parent=35 // pred_fallthru
              _
            // Predicated region
            $region41: #{tpu_custom_call.1} parent=35 // pred_check
              _
            $region42: #{tpu_custom_call.1} parent=35 // pred_check_branch
              %220 = sbr.rel target = $region44
            $region43: #{tpu_custom_call.1} parent=35 // pred_region
              loop: start=0, step=1, limit=1
              $region45: #{tpu_custom_call.1} parent=43 // loop_pre_header
                _
              $region46: #{tpu_custom_call.1} parent=43 // loop_header
                %s223 = sphi 0, %s227
                %p224 = scmp.ge.s32.totalorder %s223, 1
                %s228 = sphi %s214, %s214
                %s229 = sphi %s212, %s212
              $region47: #{tpu_custom_call.1} parent=43 // loop_header_branch
                %226 = sbr.rel (%p224) target = $region51
              $region48: #{tpu_custom_call.1} parent=43 // loop_body
                %v230 = vld [vmem:[%s228] sm:$0xff]
                %231 = vst [vmem:[%s229] sm:$0xff] %v230
                %v232 = vld [vmem:[%s228 + $0x10] sm:$0xff]
                %233 = vst [vmem:[%s229 + $0x8] sm:$0xff] %v232
              $region49: #{tpu_custom_call.1} parent=43 // loop_footer
                %s227 = sadd.s32 1, %s223
              $region50: #{tpu_custom_call.1} parent=43 // loop_footer_branch
                %222 = sbr.rel target = $region46
              $region51: #{tpu_custom_call.1} parent=43 // loop_exit
                _
            $region44: #{tpu_custom_call.1} parent=35 // pred_fallthru
              _
          $region36: #{tpu_custom_call.1} parent=31 // pred_fallthru
            _
          %250 = vnop
        $region32: #{tpu_custom_call.1} parent=23 // pred_fallthru
          _
        // Predicated region
        $region67: #{tpu_custom_call.1} parent=23 // pred_check
          %p251 = pneg %p140
        $region68: #{tpu_custom_call.1} parent=23 // pred_check_branch
          %253 = sbr.rel (%p251) target = $region70
        $region69: #{tpu_custom_call.1} parent=23 // pred_region
          %p254 = scmp.lt.s32.totalorder %s21, 1
          %s255 = scalar_select %p254, %s21, 1
          %s256 = scalar_lea.vmem %s4, %s255
        $region70: #{tpu_custom_call.1} parent=23 // pred_fallthru
          _
      $region24: #{tpu_custom_call.1} parent=5 // pred_fallthru
        _
      %p257 = scmp.le.s32.totalorder 1, %s14
      %p258 = scmp.lt.s32.totalorder %s14, 5
      %p259 = pnand %p257, %p258
      %p260 = pneg %p259
      // Predicated region
      $region71: #{tpu_custom_call.1} parent=5 // pred_check
        _
      $region72: #{tpu_custom_call.1} parent=5 // pred_check_branch
        %262 = sbr.rel (%p259) target = $region74
      $region73: #{tpu_custom_call.1} parent=5 // pred_region
        %s263 = ssub.s32 %s14, 1
        %s264 = sand.u32 %s107, 1
        %s265 = sand.u32 %s107, 1
        %s266 = smul.addr %s265, 16
        %s267 = scalar_lea.vmem [#allocation2], %s266
        // Predicated region
        $region75: #{tpu_custom_call.1} parent=73 // pred_check
          %p268 = pneg %p120
        $region76: #{tpu_custom_call.1} parent=73 // pred_check_branch
          %270 = sbr.rel (%p268) target = $region78
        $region77: #{tpu_custom_call.1} parent=73 // pred_region
          _
        $region78: #{tpu_custom_call.1} parent=73 // pred_fallthru
          _
        %p271 = scmp.lt.s32.totalorder %s24, 1
        %s272 = scalar_select %p271, %s24, 1
        %s273 = smul.addr %s272, 8
        %s274 = scalar_lea.vmem %s0, %s273
        %p275 = pneg %p52
        %p276 = pneg %p49
        %p277 = pneg %p73
        %p278 = pneg %p70
        %p279 = pneg %p94
        %p280 = pneg %p91
        %s281 = sand.u32 %s107, 1
        %s282 = sand.u32 %s107, 1
        %s283 = smul.addr %s282, 16
        %s284 = scalar_lea.vmem [#allocation2], %s283
        %p285 = pneg %p120
        %p286 = pneg %p117
        %p287 = scmp.lt.s32.totalorder %s23, 1
        %s288 = scalar_select %p287, %s23, 1
        %s289 = scalar_lea.vmem %s4, %s288
        %p290 = pneg %p146
        %p291 = pneg %p143
        %p292 = pneg %p174
        %p293 = pneg %p171
        %s294 = sand.u32 %s161, 1
        %s295 = scalar_lea.sflag [#allocation4], %s294
        %s296 = sand.u32 %s161, 1
        %s297 = smul.addr %s296, 8
        %s298 = scalar_lea.vmem [#allocation3], %s297
        %p299 = scmp.lt.s32.totalorder %s24, 1
        %s300 = scalar_select %p299, %s24, 1
        %s301 = smul.addr %s300, 8
        %s302 = scalar_lea.vmem %s0, %s301
        %p303 = scmp.lt.s32.totalorder %s23, 1
        %s304 = scalar_select %p303, %s23, 1
        %s305 = scalar_lea.vmem %s4, %s304
        %v306 = vld [vmem:[%s302] sm:$0xff]
        %v307 = vld [vmem:[%s1] sm:$0xff]
        %v308 = vld [vmem:[%s1 + $0x8] sm:$0xff]
        %v309 = vld [vmem:[%s1 + $0x10] sm:$0xff]
        %v310 = vld [vmem:[%s1 + $0x18] sm:$0xff]
        %v311 = vld [vmem:[%s2] sm:$0x1]
        %v313 = vlaneseq
        %v314 = vshrl.u32 %v313, 7
        %v315 = vsub.s32 0, %v314
        %v316 = vrot.slane %v311, %v315
        %vm318 = vcmask 261120
        %v320 = vsel %vm318, %v306, 0
        %322 = vmatprep.subr.mxu0 0.0
        %323 = vmatpush1.msra.mxu0 %v307
        %324 = vmatprep.subr.mxu0 0.0
        %325 = vmatpush1.msra.mxu0 %v308
        %326 = vmatprep.subr.mxu0 0.0
        %327 = vmatpush1.msra.mxu0 %v309
        %328 = vmatprep.subr.mxu0 0.0
        %329 = vmatpush1.msra.mxu0 %v310
        %330 = vmatprep.subr.mxu0 0.0
        %331 = vmatpush1.msra.mxu0 0.0
        %332 = vmatprep.subr.mxu0 0.0
        %333 = vmatpush1.msra.mxu0 0.0
        %334 = vmatprep.subr.mxu0 0.0
        %335 = vmatpush1.msra.mxu0 0.0
        %336 = vmatprep.subr.mxu0 0.0
        %337 = vmatpush1.msra.mxu0 0.0
        %338 = vmatprep.subr.mxu0 0.0
        %339 = vmatpush1.msra.mxu0 0.0
        %340 = vmatprep.subr.mxu0 0.0
        %341 = vmatpush1.msra.mxu0 0.0
        %342 = vmatprep.subr.mxu0 0.0
        %343 = vmatpush1.msra.mxu0 0.0
        %344 = vmatprep.subr.mxu0 0.0
        %345 = vmatpush1.msra.mxu0 0.0
        %346 = vmatprep.subr.mxu0 0.0
        %347 = vmatpush1.msra.mxu0 0.0
        %348 = vmatprep.subr.mxu0 0.0
        %349 = vmatpush1.msra.mxu0 0.0
        %350 = vmatprep.subr.mxu0 0.0
        %351 = vmatpush1.msra.mxu0 0.0
        %352 = vmatprep.subr.mxu0 0.0
        %353 = vmatpush1.msra.mxu0 0.0
        %354 = vmatprep.subr.mxu0 0.0
        %355 = vmatpush1.msra.mxu0 0.0
        %356 = vmatprep.subr.mxu0 0.0
        %357 = vmatpush1.msra.mxu0 0.0
        %358 = vmatprep.subr.mxu0 0.0
        %359 = vmatpush1.msra.mxu0 0.0
        %360 = vmatprep.subr.mxu0 0.0
        %361 = vmatpush1.msra.mxu0 0.0
        %362 = vmatprep.subr.mxu0 0.0
        %363 = vmatpush1.msra.mxu0 0.0
        %364 = vmatprep.subr.mxu0 0.0
        %365 = vmatpush1.msra.mxu0 0.0
        %366 = vmatprep.subr.mxu0 0.0
        %367 = vmatpush1.msra.mxu0 0.0
        %368 = vmatprep.subr.mxu0 0.0
        %369 = vmatpush1.msra.mxu0 0.0
        %370 = vmatprep.subr.mxu0 0.0
        %371 = vmatpush1.msra.mxu0 0.0
        %372 = vmatprep.subr.mxu0 0.0
        %373 = vmatpush1.msra.mxu0 0.0
        %374 = vmatprep.subr.mxu0 0.0
        %375 = vmatpush1.msra.mxu0 0.0
        %376 = vmatprep.subr.mxu0 0.0
        %377 = vmatpush1.msra.mxu0 0.0
        %378 = vmatprep.subr.mxu0 0.0
        %379 = vmatpush1.msra.mxu0 0.0
        %380 = vmatprep.subr.mxu0 0.0
        %381 = vmatpush1.msra.mxu0 0.0
        %382 = vmatprep.subr.mxu0 0.0
        %383 = vmatpush1.msra.mxu0 0.0
        %384 = vmatprep.subr.mxu0 0.0
        %385 = vmatpush1.msra.mxu0 0.0
        %386 = vmatprep.mubr.f32.mxu0 0.0
        %387 = vmatmul.mubr.f32.gmra.mrb[0].mxu0 %v320
        %v388 = vpop.f32.mrb[0].mxu0
        %v389 = vadd.f32 %v316, %v388
        %v390 = vpop.f32.mrb[0].mxu0
        %391 = vdwg.mxu0
        %v392 = vtanh.pop %v389
        %v393 = vld [vmem:[%s267] sm:$0xff]
        %v394 = vld [vmem:[%s267 + $0x8] sm:$0xff]
        %v395 = vld [vmem:[%s305] sm:$0x1]
        %v397 = vlaneseq
        %v398 = vshrl.u32 %v397, 7
        %v399 = vsub.s32 0, %v398
        %v400 = vrot.slane %v395, %v399
        %vm402 = vcmask 130048
        %v404 = vsel %vm402, %v392, 0
        %406 = vmatprep.subr.mxu0 0.0
        %407 = vmatpush1.msra.mxu0 %v393
        %408 = vmatprep.subr.mxu0 0.0
        %409 = vmatpush1.msra.mxu0 %v394
        %410 = vmatprep.subr.mxu0 0.0
        %411 = vmatpush1.msra.mxu0 0.0
        %412 = vmatprep.subr.mxu0 0.0
        %413 = vmatpush1.msra.mxu0 0.0
        %414 = vmatprep.subr.mxu0 0.0
        %415 = vmatpush1.msra.mxu0 0.0
        %416 = vmatprep.subr.mxu0 0.0
        %417 = vmatpush1.msra.mxu0 0.0
        %418 = vmatprep.subr.mxu0 0.0
        %419 = vmatpush1.msra.mxu0 0.0
        %420 = vmatprep.subr.mxu0 0.0
        %421 = vmatpush1.msra.mxu0 0.0
        %422 = vmatprep.subr.mxu0 0.0
        %423 = vmatpush1.msra.mxu0 0.0
        %424 = vmatprep.subr.mxu0 0.0
        %425 = vmatpush1.msra.mxu0 0.0
        %426 = vmatprep.subr.mxu0 0.0
        %427 = vmatpush1.msra.mxu0 0.0
        %428 = vmatprep.subr.mxu0 0.0
        %429 = vmatpush1.msra.mxu0 0.0
        %430 = vmatprep.subr.mxu0 0.0
        %431 = vmatpush1.msra.mxu0 0.0
        %432 = vmatprep.subr.mxu0 0.0
        %433 = vmatpush1.msra.mxu0 0.0
        %434 = vmatprep.subr.mxu0 0.0
        %435 = vmatpush1.msra.mxu0 0.0
        %436 = vmatprep.subr.mxu0 0.0
        %437 = vmatpush1.msra.mxu0 0.0
        %438 = vmatprep.subr.mxu0 0.0
        %439 = vmatpush1.msra.mxu0 0.0
        %440 = vmatprep.subr.mxu0 0.0
        %441 = vmatpush1.msra.mxu0 0.0
        %442 = vmatprep.subr.mxu0 0.0
        %443 = vmatpush1.msra.mxu0 0.0
        %444 = vmatprep.subr.mxu0 0.0
        %445 = vmatpush1.msra.mxu0 0.0
        %446 = vmatprep.subr.mxu0 0.0
        %447 = vmatpush1.msra.mxu0 0.0
        %448 = vmatprep.subr.mxu0 0.0
        %449 = vmatpush1.msra.mxu0 0.0
        %450 = vmatprep.subr.mxu0 0.0
        %451 = vmatpush1.msra.mxu0 0.0
        %452 = vmatprep.subr.mxu0 0.0
        %453 = vmatpush1.msra.mxu0 0.0
        %454 = vmatprep.subr.mxu0 0.0
        %455 = vmatpush1.msra.mxu0 0.0
        %456 = vmatprep.subr.mxu0 0.0
        %457 = vmatpush1.msra.mxu0 0.0
        %458 = vmatprep.subr.mxu0 0.0
        %459 = vmatpush1.msra.mxu0 0.0
        %460 = vmatprep.subr.mxu0 0.0
        %461 = vmatpush1.msra.mxu0 0.0
        %462 = vmatprep.subr.mxu0 0.0
        %463 = vmatpush1.msra.mxu0 0.0
        %464 = vmatprep.subr.mxu0 0.0
        %465 = vmatpush1.msra.mxu0 0.0
        %466 = vmatprep.subr.mxu0 0.0
        %467 = vmatpush1.msra.mxu0 0.0
        %468 = vmatprep.subr.mxu0 0.0
        %469 = vmatpush1.msra.mxu0 0.0
        %470 = vmatprep.mubr.f32.mxu0 0.0
        %471 = vmatmul.mubr.f32.gmra.mrb[0].mxu0 %v404
        %v472 = vpop.f32.mrb[0].mxu0
        %v473 = vadd.f32 %v400, %v472
        %v474 = vpop.f32.mrb[0].mxu0
        %475 = vdwg.mxu0
        %476 = vst [vmem:[%s298] sm:$0xff] %v473
        %s477 = sand.u32 %s161, 1
        %s478 = scalar_lea.sflag [#allocation4], %s477
        %s479 = sand.u32 %s161, 1
        %s480 = smul.addr %s479, 8
        %s481 = scalar_lea.vmem [#allocation3], %s480
        // Predicated region
        $region79: #{tpu_custom_call.1} parent=73 // pred_check
          %p482 = pneg %p171
        $region80: #{tpu_custom_call.1} parent=73 // pred_check_branch
          %484 = sbr.rel (%p482) target = $region82
        $region81: #{tpu_custom_call.1} parent=73 // pred_region
          %s486 = ssub.s32 128, 128
          %487 = vsyncadd %s478, %s486
          %s488 = smul.addr %s24, 2
          %s489 = sadd.s32 %s23, %s488
          %s490 = smul.addr %s489, 128
          %s491 = scalar_lea.hbm %s5, %s490
          %s493 = sshll.u32 %s481, 4
          %s494 = int_to_ptr.vmem [resolvable:$true] %s493
          %496 = dma.vmem_to_hbm [thread:$0]  %s494, 128, %s491, %s478
        $region82: #{tpu_custom_call.1} parent=73 // pred_fallthru
          _
      $region74: #{tpu_custom_call.1} parent=5 // pred_fallthru
        _
      %p497 = scmp.le.s32.totalorder 2, %s14
      // Predicated region
      $region83: #{tpu_custom_call.1} parent=5 // pred_check
        %p498 = pneg %p497
      $region84: #{tpu_custom_call.1} parent=5 // pred_check_branch
        %500 = sbr.rel (%p498) target = $region86
      $region85: #{tpu_custom_call.1} parent=5 // pred_region
        %s501 = ssub.s32 %s14, 2
        // Predicated region
        $region87: #{tpu_custom_call.1} parent=85 // pred_check
          %p502 = pneg %p177
        $region88: #{tpu_custom_call.1} parent=85 // pred_check_branch
          %504 = sbr.rel (%p502) target = $region90
        $region89: #{tpu_custom_call.1} parent=85 // pred_region
          %s505 = sand.u32 %s162, 1
          %s506 = scalar_lea.sflag [#allocation4], %s505
          %s507 = sand.u32 %s162, 1
          %s508 = smul.addr %s507, 8
          %s509 = scalar_lea.vmem [#allocation3], %s508
          %510 = dma.done %s506, 128
        $region90: #{tpu_custom_call.1} parent=85 // pred_fallthru
          _
      $region86: #{tpu_custom_call.1} parent=5 // pred_fallthru
        _
    $region6: #{tpu_custom_call.1} parent=1 // loop_footer
      %s18 = sadd.s32 1, %s14
    $region7: #{tpu_custom_call.1} parent=1 // loop_footer_branch
      %13 = sbr.rel target = $region3
    $region8: #{tpu_custom_call.1} parent=1 // loop_exit
      _
    %511 = vsyncpa [#allocation4], 1
    %s512 = scalar_lea.sflag [#allocation4], 1
    %513 = vsyncpa %s512, 1

</llo_original>
